<compile_context>
chip_gen: v7x
topology: tpu7x:2x2x1
jax: 0.10.0
libtpu: 0.0.40
codegen_flags: <defaults>
</compile_context>

<pallas_src>
import jax
import jax.numpy as jnp
from jax.experimental import pallas as pl
from jax.experimental.pallas import tpu as pltpu


def _round_up(n: int, m: int) -> int:
    return ((n + m - 1) // m) * m


def tt_matmul_kernel(x_ref, w_ref, o_ref):
    # x_ref: (TB, IN) f32 | w_ref: (IN, OUT) f32 | o_ref: (TB, OUT) f32
    o_ref[...] = jnp.dot(x_ref[...], w_ref[...],
                         preferred_element_type=jnp.float32)


def reconstruct_tt_weight(core0, core1):
    """Pure-JAX replica of TTLinear.reconstruct_weight (tiny: IN x OUT ~ 31 KB)."""
    I1, O1 = core0.shape[1], core0.shape[2]
    I2, O2 = core1.shape[1], core1.shape[2]
    w = jnp.tensordot(core0, core1, axes=([-1], [0]))  # (1, I1, O1, I2, O2, 1)
    w = jnp.squeeze(jnp.squeeze(w, 0), -1)             # (I1, O1, I2, O2)
    w = jnp.transpose(w, (0, 2, 1, 3)).reshape(I1 * I2, O1 * O2)
    return w


def tt_net_forward(x, core0, core1, *, block_b: int = 1024):
    """x: (B, 1, H, W) NCHW; core0: (1, I1, O1, R); core1: (R, I2, O2, 1)."""
    B = x.shape[0]
    I1, O1 = core0.shape[1], core0.shape[2]
    I2, O2 = core1.shape[1], core1.shape[2]
    IN, OUT = I1 * I2, O1 * O2

    # One-time parameter glue (exactly the PyTorch tensordot/permute/view path).
    w = reconstruct_tt_weight(core0, core1).astype(jnp.float32)     # (IN, OUT)
    # Flat view of x, no cast, no pad — a single f32 HBM read inside the kernel.
    x2 = x.reshape(B, IN).astype(jnp.float32)                       # (B, IN)

    # Batch tile: multiple of 8 sublanes, capped at block_b, and sized so the
    # grid has >=2 steps when possible (lets v7x shard the batch across its
    # two TensorCores).  Partial last block is handled by Pallas masking.
    tb = min(block_b, max(8, _round_up(pl.cdiv(B, 2), 8)))
    grid = (pl.cdiv(B, tb),)

    out = pl.pallas_call(
        tt_matmul_kernel,
        out_shape=jax.ShapeDtypeStruct((B, OUT), jnp.float32),
        grid=grid,
        in_specs=[
            pl.BlockSpec((tb, IN), lambda b: (b, 0)),    # streamed batch tile
            pl.BlockSpec((IN, OUT), lambda b: (0, 0)),   # W: resident, fetched once
        ],
        out_specs=pl.BlockSpec((tb, OUT), lambda b: (b, 0)),
        compiler_params=pltpu.CompilerParams(
            dimension_semantics=("parallel",)),
        cost_estimate=pl.CostEstimate(
            flops=2 * B * IN * OUT,
            transcendentals=0,
            bytes_accessed=B * IN * 4 + IN * OUT * 4 + B * OUT * 4),
    )(x2, w)

    return out


def tt_net_reference(x, core0, core1):
    """Pure-JAX f32 replica of the PyTorch reconstruct_weight + F.linear path."""
    B = x.shape[0]
    w = reconstruct_tt_weight(core0, core1)
    return x.reshape(B, -1).astype(jnp.float32) @ w.astype(jnp.float32)


if __name__ == "__main__":
    in_shape = (28, 28)
    out_shape = (2, 5)
    tt_rank = [1, 2, 1]
    B = 2

    key = jax.random.PRNGKey(0)
    k0, k1, kx = jax.random.split(key, 3)
    # Deterministic synthetic parameters (same shapes as torch.randn in __init__).
    core0 = jax.random.normal(
        k0, (tt_rank[0], in_shape[0], out_shape[0], tt_rank[1]), jnp.float32)
    core1 = jax.random.normal(
        k1, (tt_rank[1], in_shape[1], out_shape[1], tt_rank[2]), jnp.float32)
    # MNIST-like NCHW input.
    x = jax.random.normal(kx, (B, 1, in_shape[0], in_shape[1]), jnp.float32)

    y = jax.block_until_ready(tt_net_forward(x, core0, core1))
    assert y.shape == (B, out_shape[0] * out_shape[1]), y.shape

    # Semantics check vs. the f32 PyTorch path (tolerance covers MXU matmul
    # rounding; operands themselves are un-quantized f32 now).
    y_ref = tt_net_reference(x, core0, core1)
    err = float(jnp.max(jnp.abs(y - y_ref)))
    assert jnp.allclose(y, y_ref, rtol=2e-2, atol=1.0), err
    assert bool(jnp.all(jnp.isfinite(y)))

    print("KERNEL_OK")
</pallas_src>

<mosaic_0001>
module attributes {stable_mosaic.version = 11 : i64} {
  func.func @tt_matmul_kernel(%arg0: i32, %arg1: memref<8x784xf32, #tpu.memory_space<vmem>>, %arg2: memref<784x10xf32, #tpu.memory_space<vmem>>, %arg3: memref<8x10xf32, #tpu.memory_space<vmem>>) attributes {dimension_semantics = [#tpu.dimension_semantics<parallel>], iteration_bounds = array<i64: 1>, scalar_prefetch = 0 : i64, scratch_operands = 0 : i64, tpu.core_type = #tpu.core_type<tc>, window_params = [{transform_indices = @transform_0, window_bounds = array<i64: 8, 784>}, {pipeline_mode = #tpu.pipeline_mode<synchronous>, transform_indices = @transform_1, window_bounds = array<i64: 784, 10>}, {transform_indices = @transform_2, window_bounds = array<i64: 8, 10>}]} {
    %c0 = arith.constant 0 : index
    %c0_0 = arith.constant 0 : index
    %0 = vector.load %arg1[%c0, %c0_0] : memref<8x784xf32, #tpu.memory_space<vmem>>, vector<8x784xf32>
    %c0_1 = arith.constant 0 : index
    %c0_2 = arith.constant 0 : index
    %1 = vector.load %arg2[%c0_1, %c0_2] : memref<784x10xf32, #tpu.memory_space<vmem>>, vector<784x10xf32>
    %cst = arith.constant dense<0.000000e+00> : vector<8x10xf32>
    %2 = tpu.matmul %0, %1, %cst {dimension_numbers = #tpu.dot_dimension_numbers<[1], [0], [0], [1], [0, 0, 1, 1], [], []>} : vector<8x784xf32>, vector<784x10xf32>, vector<8x10xf32> -> vector<8x10xf32>
    %c0_3 = arith.constant 0 : index
    %c0_4 = arith.constant 0 : index
    %3 = vector.load %arg3[%c0_3, %c0_4] : memref<8x10xf32, #tpu.memory_space<vmem>>, vector<8x10xf32>
    tpu.vector_store %arg3[%c0_3, %c0_4], %2 {strides = array<i32>} : memref<8x10xf32, #tpu.memory_space<vmem>>, vector<8x10xf32>,
    return
  }
  func.func @transform_0(%arg0: i32) -> (i32, i32) {
    %c0_i32 = arith.constant 0 : i32
    %c0_i32_0 = arith.constant 0 : i32
    return %arg0, %c0_i32 : i32, i32
  }
  func.func @transform_1(%arg0: i32) -> (i32, i32) {
    %c0_i32 = arith.constant 0 : i32
    %c0_i32_0 = arith.constant 0 : i32
    %c0_i32_1 = arith.constant 0 : i32
    return %c0_i32, %c0_i32_0 : i32, i32
  }
  func.func @transform_2(%arg0: i32) -> (i32, i32) {
    %c0_i32 = arith.constant 0 : i32
    %c0_i32_0 = arith.constant 0 : i32
    return %arg0, %c0_i32 : i32, i32
  }
}

</mosaic_0001>

<llo_original>
// kernel: tpu_custom_call.1
$region0: #{tpu_custom_call.1}
  #allocation0 [shape = 'u32[]', space=smem, size = 0x4, offset = 0x4, fixed_abs, tag = 'smem constant byte address 0x4 - core index']
  #allocation1 [shape = 'u32[144,128]{1,0:T(1,128)}', space=vmem, size = 0x12000, scoped, tag = 'internal scratch']
  %s0 = inlined_call_operand.vmem [shape: f32[2,784], index: 0, kind: input, shape index: {}]
  %s1 = inlined_call_operand.vmem [shape: f32[784,10], index: 1, kind: input, shape index: {}]
  %s2 = inlined_call_operand.hbm [shape: f32[2,10], index: 2, kind: output, shape index: {}]
  %s3 = sld [smem:[#allocation0]]
  $region18: #{tpu_custom_call.1} parent=0
    _
  %s5 = ssub.s32 1, %s3
  %s6 = scalar_select 0, %s5, %s3
  $region1: #{tpu_custom_call.1} parent=0
    #allocation2 [shape = 'u8[4096]{0}', space=vmem, size = 0x1000, scoped, tag = 'output window, operand 0, single buffered']
    #allocation3 [shape = 's32[1]{0}', space=sflag, size = 0x4, scoped, tag = 'scoped memory for tpu_custom_call.1']
    %7 = vsyncpa [#allocation3], 0
    // Predicated region
    $region2: #{tpu_custom_call.1} parent=1 // pred_check
      _
    $region3: #{tpu_custom_call.1} parent=1 // pred_check_branch
      %9 = sbr.rel (0) target = $region5
    $region4: #{tpu_custom_call.1} parent=1 // pred_region
      _
    $region5: #{tpu_custom_call.1} parent=1 // pred_fallthru
      _
    // Predicated region
    $region6: #{tpu_custom_call.1} parent=1 // pred_check
      _
    $region7: #{tpu_custom_call.1} parent=1 // pred_check_branch
      %11 = sbr.rel (0) target = $region9
    $region8: #{tpu_custom_call.1} parent=1 // pred_region
      _
    $region9: #{tpu_custom_call.1} parent=1 // pred_fallthru
      _
    %v12 = vld [vmem:[%s0] sm:$0xff]
    %v13 = vld [vmem:[%s0 + $0x8] sm:$0x3f]
    %v14 = vld [vmem:[%s0 + $0xe] sm:$0xff]
    %v15 = vld [vmem:[%s0 + $0x16] sm:$0x3f]
    %v16 = vld [vmem:[%s0 + $0x1c] sm:$0xff]
    %v17 = vld [vmem:[%s0 + $0x24] sm:$0x3f]
    %v18 = vld [vmem:[%s0 + $0x2a] sm:$0xff]
    %v19 = vld [vmem:[%s0 + $0x32] sm:$0x3f]
    %v20 = vld [vmem:[%s1] sm:$0xff]
    %v21 = vld [vmem:[%s1 + $0x8] sm:$0xff]
    %v22 = vld [vmem:[%s1 + $0x10] sm:$0xff]
    %v23 = vld [vmem:[%s1 + $0x18] sm:$0xff]
    %v24 = vld [vmem:[%s1 + $0x20] sm:$0xff]
    %v25 = vld [vmem:[%s1 + $0x28] sm:$0xff]
    %v26 = vld [vmem:[%s1 + $0x30] sm:$0xff]
    %v27 = vld [vmem:[%s1 + $0x38] sm:$0xff]
    %v28 = vld [vmem:[%s1 + $0x40] sm:$0xff]
    %v29 = vld [vmem:[%s1 + $0x48] sm:$0xff]
    %v30 = vld [vmem:[%s1 + $0x50] sm:$0xff]
    %v31 = vld [vmem:[%s1 + $0x58] sm:$0xff]
    %v32 = vld [vmem:[%s1 + $0x60] sm:$0xff]
    %v33 = vld [vmem:[%s1 + $0x68] sm:$0xff]
    %v34 = vld [vmem:[%s1 + $0x70] sm:$0xff]
    %v35 = vld [vmem:[%s1 + $0x78] sm:$0xff]
    %v36 = vld [vmem:[%s1 + $0x80] sm:$0xff]
    %v37 = vld [vmem:[%s1 + $0x88] sm:$0xff]
    %v38 = vld [vmem:[%s1 + $0x90] sm:$0xff]
    %v39 = vld [vmem:[%s1 + $0x98] sm:$0xff]
    %v40 = vld [vmem:[%s1 + $0xa0] sm:$0xff]
    %v41 = vld [vmem:[%s1 + $0xa8] sm:$0xff]
    %v42 = vld [vmem:[%s1 + $0xb0] sm:$0xff]
    %v43 = vld [vmem:[%s1 + $0xb8] sm:$0xff]
    %v44 = vld [vmem:[%s1 + $0xc0] sm:$0xff]
    %v45 = vld [vmem:[%s1 + $0xc8] sm:$0xff]
    %v46 = vld [vmem:[%s1 + $0xd0] sm:$0xff]
    %v47 = vld [vmem:[%s1 + $0xd8] sm:$0xff]
    %v48 = vld [vmem:[%s1 + $0xe0] sm:$0xff]
    %v49 = vld [vmem:[%s1 + $0xe8] sm:$0xff]
    %v50 = vld [vmem:[%s1 + $0xf0] sm:$0xff]
    %v51 = vld [vmem:[%s1 + $0xf8] sm:$0xff]
    %v52 = vld [vmem:[%s1 + $0x100] sm:$0xff]
    %v53 = vld [vmem:[%s1 + $0x108] sm:$0xff]
    %v54 = vld [vmem:[%s1 + $0x110] sm:$0xff]
    %v55 = vld [vmem:[%s1 + $0x118] sm:$0xff]
    %v56 = vld [vmem:[%s1 + $0x120] sm:$0xff]
    %v57 = vld [vmem:[%s1 + $0x128] sm:$0xff]
    %v58 = vld [vmem:[%s1 + $0x130] sm:$0xff]
    %v59 = vld [vmem:[%s1 + $0x138] sm:$0xff]
    %v60 = vld [vmem:[%s1 + $0x140] sm:$0xff]
    %v61 = vld [vmem:[%s1 + $0x148] sm:$0xff]
    %v62 = vld [vmem:[%s1 + $0x150] sm:$0xff]
    %v63 = vld [vmem:[%s1 + $0x158] sm:$0xff]
    %v64 = vld [vmem:[%s1 + $0x160] sm:$0xff]
    %v65 = vld [vmem:[%s1 + $0x168] sm:$0xff]
    %v66 = vld [vmem:[%s1 + $0x170] sm:$0xff]
    %v67 = vld [vmem:[%s1 + $0x178] sm:$0xff]
    %v68 = vld [vmem:[%s1 + $0x180] sm:$0xff]
    %v69 = vld [vmem:[%s1 + $0x188] sm:$0xff]
    %v70 = vld [vmem:[%s1 + $0x190] sm:$0xff]
    %v71 = vld [vmem:[%s1 + $0x198] sm:$0xff]
    %v72 = vld [vmem:[%s1 + $0x1a0] sm:$0xff]
    %v73 = vld [vmem:[%s1 + $0x1a8] sm:$0xff]
    %v74 = vld [vmem:[%s1 + $0x1b0] sm:$0xff]
    %v75 = vld [vmem:[%s1 + $0x1b8] sm:$0xff]
    %v76 = vld [vmem:[%s1 + $0x1c0] sm:$0xff]
    %v77 = vld [vmem:[%s1 + $0x1c8] sm:$0xff]
    %v78 = vld [vmem:[%s1 + $0x1d0] sm:$0xff]
    %v79 = vld [vmem:[%s1 + $0x1d8] sm:$0xff]
    %v80 = vld [vmem:[%s1 + $0x1e0] sm:$0xff]
    %v81 = vld [vmem:[%s1 + $0x1e8] sm:$0xff]
    %v82 = vld [vmem:[%s1 + $0x1f0] sm:$0xff]
    %v83 = vld [vmem:[%s1 + $0x1f8] sm:$0xff]
    %v84 = vld [vmem:[%s1 + $0x200] sm:$0xff]
    %v85 = vld [vmem:[%s1 + $0x208] sm:$0xff]
    %v86 = vld [vmem:[%s1 + $0x210] sm:$0xff]
    %v87 = vld [vmem:[%s1 + $0x218] sm:$0xff]
    %v88 = vld [vmem:[%s1 + $0x220] sm:$0xff]
    %v89 = vld [vmem:[%s1 + $0x228] sm:$0xff]
    %v90 = vld [vmem:[%s1 + $0x230] sm:$0xff]
    %v91 = vld [vmem:[%s1 + $0x238] sm:$0xff]
    %v92 = vld [vmem:[%s1 + $0x240] sm:$0xff]
    %v93 = vld [vmem:[%s1 + $0x248] sm:$0xff]
    %v94 = vld [vmem:[%s1 + $0x250] sm:$0xff]
    %v95 = vld [vmem:[%s1 + $0x258] sm:$0xff]
    %v96 = vld [vmem:[%s1 + $0x260] sm:$0xff]
    %v97 = vld [vmem:[%s1 + $0x268] sm:$0xff]
    %v98 = vld [vmem:[%s1 + $0x270] sm:$0xff]
    %v99 = vld [vmem:[%s1 + $0x278] sm:$0xff]
    %v100 = vld [vmem:[%s1 + $0x280] sm:$0xff]
    %v101 = vld [vmem:[%s1 + $0x288] sm:$0xff]
    %v102 = vld [vmem:[%s1 + $0x290] sm:$0xff]
    %v103 = vld [vmem:[%s1 + $0x298] sm:$0xff]
    %v104 = vld [vmem:[%s1 + $0x2a0] sm:$0xff]
    %v105 = vld [vmem:[%s1 + $0x2a8] sm:$0xff]
    %v106 = vld [vmem:[%s1 + $0x2b0] sm:$0xff]
    %v107 = vld [vmem:[%s1 + $0x2b8] sm:$0xff]
    %v108 = vld [vmem:[%s1 + $0x2c0] sm:$0xff]
    %v109 = vld [vmem:[%s1 + $0x2c8] sm:$0xff]
    %v110 = vld [vmem:[%s1 + $0x2d0] sm:$0xff]
    %v111 = vld [vmem:[%s1 + $0x2d8] sm:$0xff]
    %v112 = vld [vmem:[%s1 + $0x2e0] sm:$0xff]
    %v113 = vld [vmem:[%s1 + $0x2e8] sm:$0xff]
    %v114 = vld [vmem:[%s1 + $0x2f0] sm:$0xff]
    %v115 = vld [vmem:[%s1 + $0x2f8] sm:$0xff]
    %v116 = vld [vmem:[%s1 + $0x300] sm:$0xff]
    %v117 = vld [vmem:[%s1 + $0x308] sm:$0xff]
    %v126 = vcombine.low %v12, %v14
    %v127 = vcombine.high %v12, %v14
    %v128 = vcombine.low %v16, %v18
    %v129 = vcombine.high %v16, %v18
    %v131 = vunpack.c.l.s4 1983009808
    %v132 = vunpack.c.0.s8 %v131
    %v133 = vlaneseq
    %v134 = vshrl.u32 %v133, 7
    %v135 = vsub.s32 %v132, %v134
    %v136 = vrot.slane %v126, %v135
    %v138 = vunpack.c.l.s4 1983009808
    %v139 = vunpack.c.0.s8 %v138
    %v140 = vlaneseq
    %v141 = vshrl.u32 %v140, 7
    %v142 = vsub.s32 %v139, %v141
    %v143 = vrot.slane %v127, %v142
    %v145 = vunpack.c.l.s4 1983009808
    %v146 = vunpack.c.0.s8 %v145
    %v147 = vlaneseq
    %v148 = vshrl.u32 %v147, 7
    %v149 = vsub.s32 %v146, %v148
    %v150 = vrot.slane %v128, %v149
    %v152 = vunpack.c.l.s4 1983009808
    %v153 = vunpack.c.0.s8 %v152
    %v154 = vlaneseq
    %v155 = vshrl.u32 %v154, 7
    %v156 = vsub.s32 %v153, %v155
    %v157 = vrot.slane %v129, %v156
    %v158 = vcombine.low %v136, %v150
    %v159 = vcombine.high %v136, %v150
    %v160 = vcombine.low %v143, %v157
    %v161 = vcombine.high %v143, %v157
    %v162 = vcombine.low %v13, %v15
    %v163 = vcombine.high %v13, %v15
    %v164 = vcombine.low %v17, %v19
    %v165 = vcombine.high %v17, %v19
    %v167 = vunpack.c.l.s4 1983009808
    %v168 = vunpack.c.0.s8 %v167
    %v169 = vlaneseq
    %v170 = vshrl.u32 %v169, 7
    %v171 = vsub.s32 %v168, %v170
    %v172 = vrot.slane %v162, %v171
    %v174 = vunpack.c.l.s4 1983009808
    %v175 = vunpack.c.0.s8 %v174
    %v176 = vlaneseq
    %v177 = vshrl.u32 %v176, 7
    %v178 = vsub.s32 %v175, %v177
    %v179 = vrot.slane %v163, %v178
    %v181 = vunpack.c.l.s4 1983009808
    %v182 = vunpack.c.0.s8 %v181
    %v183 = vlaneseq
    %v184 = vshrl.u32 %v183, 7
    %v185 = vsub.s32 %v182, %v184
    %v186 = vrot.slane %v164, %v185
    %v188 = vunpack.c.l.s4 1983009808
    %v189 = vunpack.c.0.s8 %v188
    %v190 = vlaneseq
    %v191 = vshrl.u32 %v190, 7
    %v192 = vsub.s32 %v189, %v191
    %v193 = vrot.slane %v165, %v192
    %v194 = vcombine.low %v172, %v186
    %v195 = vcombine.high %v172, %v186
    %v196 = vcombine.low %v179, %v193
    %vm203 = vcmask 130048
    %v204 = vsel %vm203, %v196, 0
    %206 = vmatprep.subr.mxu0 0.0
    %207 = vmatpush1.msra.mxu0 %v20
    %208 = vmatprep.subr.mxu0 0.0
    %209 = vmatpush1.msra.mxu0 %v21
    %210 = vmatprep.subr.mxu0 0.0
    %211 = vmatpush1.msra.mxu0 %v22
    %212 = vmatprep.subr.mxu0 0.0
    %213 = vmatpush1.msra.mxu0 %v23
    %214 = vmatprep.subr.mxu0 0.0
    %215 = vmatpush1.msra.mxu0 %v24
    %216 = vmatprep.subr.mxu0 0.0
    %217 = vmatpush1.msra.mxu0 %v25
    %218 = vmatprep.subr.mxu0 0.0
    %219 = vmatpush1.msra.mxu0 %v26
    %220 = vmatprep.subr.mxu0 0.0
    %221 = vmatpush1.msra.mxu0 %v27
    %222 = vmatprep.subr.mxu0 0.0
    %223 = vmatpush1.msra.mxu0 %v28
    %224 = vmatprep.subr.mxu0 0.0
    %225 = vmatpush1.msra.mxu0 %v29
    %226 = vmatprep.subr.mxu0 0.0
    %227 = vmatpush1.msra.mxu0 %v30
    %228 = vmatprep.subr.mxu0 0.0
    %229 = vmatpush1.msra.mxu0 %v31
    %230 = vmatprep.subr.mxu0 0.0
    %231 = vmatpush1.msra.mxu0 %v32
    %232 = vmatprep.subr.mxu0 0.0
    %233 = vmatpush1.msra.mxu0 %v33
    %234 = vmatprep.subr.mxu0 0.0
    %235 = vmatpush1.msra.mxu0 %v34
    %236 = vmatprep.subr.mxu0 0.0
    %237 = vmatpush1.msra.mxu0 %v35
    %238 = vmatprep.subr.mxu0 0.0
    %239 = vmatpush1.msra.mxu0 %v36
    %240 = vmatprep.subr.mxu0 0.0
    %241 = vmatpush1.msra.mxu0 %v37
    %242 = vmatprep.subr.mxu0 0.0
    %243 = vmatpush1.msra.mxu0 %v38
    %244 = vmatprep.subr.mxu0 0.0
    %245 = vmatpush1.msra.mxu0 %v39
    %246 = vmatprep.subr.mxu0 0.0
    %247 = vmatpush1.msra.mxu0 %v40
    %248 = vmatprep.subr.mxu0 0.0
    %249 = vmatpush1.msra.mxu0 %v41
    %250 = vmatprep.subr.mxu0 0.0
    %251 = vmatpush1.msra.mxu0 %v42
    %252 = vmatprep.subr.mxu0 0.0
    %253 = vmatpush1.msra.mxu0 %v43
    %254 = vmatprep.subr.mxu0 0.0
    %255 = vmatpush1.msra.mxu0 %v44
    %256 = vmatprep.subr.mxu0 0.0
    %257 = vmatpush1.msra.mxu0 %v45
    %258 = vmatprep.subr.mxu0 0.0
    %259 = vmatpush1.msra.mxu0 %v46
    %260 = vmatprep.subr.mxu0 0.0
    %261 = vmatpush1.msra.mxu0 %v47
    %262 = vmatprep.subr.mxu0 0.0
    %263 = vmatpush1.msra.mxu0 %v48
    %264 = vmatprep.subr.mxu0 0.0
    %265 = vmatpush1.msra.mxu0 %v49
    %266 = vmatprep.subr.mxu0 0.0
    %267 = vmatpush1.msra.mxu0 %v50
    %268 = vmatprep.subr.mxu0 0.0
    %269 = vmatpush1.msra.mxu0 %v51
    %270 = vmatprep.mubr.f32.mxu0 %v159
    %271 = vmatmul.mubr.f32.gmra.mrb[0].mxu0 %v158
    %v272 = vpop.f32.mrb[0].mxu0
    %v273 = vadd.f32 0.0, %v272
    %v274 = vpop.f32.mrb[0].mxu0
    %275 = vdwg.mxu0
    %276 = vmatprep.subr.mxu0 0.0
    %277 = vmatpush1.msra.mxu0 %v52
    %278 = vmatprep.subr.mxu0 0.0
    %279 = vmatpush1.msra.mxu0 %v53
    %280 = vmatprep.subr.mxu0 0.0
    %281 = vmatpush1.msra.mxu0 %v54
    %282 = vmatprep.subr.mxu0 0.0
    %283 = vmatpush1.msra.mxu0 %v55
    %284 = vmatprep.subr.mxu0 0.0
    %285 = vmatpush1.msra.mxu0 %v56
    %286 = vmatprep.subr.mxu0 0.0
    %287 = vmatpush1.msra.mxu0 %v57
    %288 = vmatprep.subr.mxu0 0.0
    %289 = vmatpush1.msra.mxu0 %v58
    %290 = vmatprep.subr.mxu0 0.0
    %291 = vmatpush1.msra.mxu0 %v59
    %292 = vmatprep.subr.mxu0 0.0
    %293 = vmatpush1.msra.mxu0 %v60
    %294 = vmatprep.subr.mxu0 0.0
    %295 = vmatpush1.msra.mxu0 %v61
    %296 = vmatprep.subr.mxu0 0.0
    %297 = vmatpush1.msra.mxu0 %v62
    %298 = vmatprep.subr.mxu0 0.0
    %299 = vmatpush1.msra.mxu0 %v63
    %300 = vmatprep.subr.mxu0 0.0
    %301 = vmatpush1.msra.mxu0 %v64
    %302 = vmatprep.subr.mxu0 0.0
    %303 = vmatpush1.msra.mxu0 %v65
    %304 = vmatprep.subr.mxu0 0.0
    %305 = vmatpush1.msra.mxu0 %v66
    %306 = vmatprep.subr.mxu0 0.0
    %307 = vmatpush1.msra.mxu0 %v67
    %308 = vmatprep.subr.mxu0 0.0
    %309 = vmatpush1.msra.mxu0 %v68
    %310 = vmatprep.subr.mxu0 0.0
    %311 = vmatpush1.msra.mxu0 %v69
    %312 = vmatprep.subr.mxu0 0.0
    %313 = vmatpush1.msra.mxu0 %v70
    %314 = vmatprep.subr.mxu0 0.0
    %315 = vmatpush1.msra.mxu0 %v71
    %316 = vmatprep.subr.mxu0 0.0
    %317 = vmatpush1.msra.mxu0 %v72
    %318 = vmatprep.subr.mxu0 0.0
    %319 = vmatpush1.msra.mxu0 %v73
    %320 = vmatprep.subr.mxu0 0.0
    %321 = vmatpush1.msra.mxu0 %v74
    %322 = vmatprep.subr.mxu0 0.0
    %323 = vmatpush1.msra.mxu0 %v75
    %324 = vmatprep.subr.mxu0 0.0
    %325 = vmatpush1.msra.mxu0 %v76
    %326 = vmatprep.subr.mxu0 0.0
    %327 = vmatpush1.msra.mxu0 %v77
    %328 = vmatprep.subr.mxu0 0.0
    %329 = vmatpush1.msra.mxu0 %v78
    %330 = vmatprep.subr.mxu0 0.0
    %331 = vmatpush1.msra.mxu0 %v79
    %332 = vmatprep.subr.mxu0 0.0
    %333 = vmatpush1.msra.mxu0 %v80
    %334 = vmatprep.subr.mxu0 0.0
    %335 = vmatpush1.msra.mxu0 %v81
    %336 = vmatprep.subr.mxu0 0.0
    %337 = vmatpush1.msra.mxu0 %v82
    %338 = vmatprep.subr.mxu0 0.0
    %339 = vmatpush1.msra.mxu0 %v83
    %340 = vmatprep.mubr.f32.mxu0 %v161
    %341 = vmatmul.mubr.f32.gmra.mrb[0].mxu0 %v160
    %v342 = vpop.f32.mrb[0].mxu0
    %v343 = vadd.f32 %v273, %v342
    %v344 = vpop.f32.mrb[0].mxu0
    %345 = vdwg.mxu0
    %346 = vmatprep.subr.mxu0 0.0
    %347 = vmatpush1.msra.mxu0 %v84
    %348 = vmatprep.subr.mxu0 0.0
    %349 = vmatpush1.msra.mxu0 %v85
    %350 = vmatprep.subr.mxu0 0.0
    %351 = vmatpush1.msra.mxu0 %v86
    %352 = vmatprep.subr.mxu0 0.0
    %353 = vmatpush1.msra.mxu0 %v87
    %354 = vmatprep.subr.mxu0 0.0
    %355 = vmatpush1.msra.mxu0 %v88
    %356 = vmatprep.subr.mxu0 0.0
    %357 = vmatpush1.msra.mxu0 %v89
    %358 = vmatprep.subr.mxu0 0.0
    %359 = vmatpush1.msra.mxu0 %v90
    %360 = vmatprep.subr.mxu0 0.0
    %361 = vmatpush1.msra.mxu0 %v91
    %362 = vmatprep.subr.mxu0 0.0
    %363 = vmatpush1.msra.mxu0 %v92
    %364 = vmatprep.subr.mxu0 0.0
    %365 = vmatpush1.msra.mxu0 %v93
    %366 = vmatprep.subr.mxu0 0.0
    %367 = vmatpush1.msra.mxu0 %v94
    %368 = vmatprep.subr.mxu0 0.0
    %369 = vmatpush1.msra.mxu0 %v95
    %370 = vmatprep.subr.mxu0 0.0
    %371 = vmatpush1.msra.mxu0 %v96
    %372 = vmatprep.subr.mxu0 0.0
    %373 = vmatpush1.msra.mxu0 %v97
    %374 = vmatprep.subr.mxu0 0.0
    %375 = vmatpush1.msra.mxu0 %v98
    %376 = vmatprep.subr.mxu0 0.0
    %377 = vmatpush1.msra.mxu0 %v99
    %378 = vmatprep.subr.mxu0 0.0
    %379 = vmatpush1.msra.mxu0 %v100
    %380 = vmatprep.subr.mxu0 0.0
    %381 = vmatpush1.msra.mxu0 %v101
    %382 = vmatprep.subr.mxu0 0.0
    %383 = vmatpush1.msra.mxu0 %v102
    %384 = vmatprep.subr.mxu0 0.0
    %385 = vmatpush1.msra.mxu0 %v103
    %386 = vmatprep.subr.mxu0 0.0
    %387 = vmatpush1.msra.mxu0 %v104
    %388 = vmatprep.subr.mxu0 0.0
    %389 = vmatpush1.msra.mxu0 %v105
    %390 = vmatprep.subr.mxu0 0.0
    %391 = vmatpush1.msra.mxu0 %v106
    %392 = vmatprep.subr.mxu0 0.0
    %393 = vmatpush1.msra.mxu0 %v107
    %394 = vmatprep.subr.mxu0 0.0
    %395 = vmatpush1.msra.mxu0 %v108
    %396 = vmatprep.subr.mxu0 0.0
    %397 = vmatpush1.msra.mxu0 %v109
    %398 = vmatprep.subr.mxu0 0.0
    %399 = vmatpush1.msra.mxu0 %v110
    %400 = vmatprep.subr.mxu0 0.0
    %401 = vmatpush1.msra.mxu0 %v111
    %402 = vmatprep.subr.mxu0 0.0
    %403 = vmatpush1.msra.mxu0 %v112
    %404 = vmatprep.subr.mxu0 0.0
    %405 = vmatpush1.msra.mxu0 %v113
    %406 = vmatprep.subr.mxu0 0.0
    %407 = vmatpush1.msra.mxu0 %v114
    %408 = vmatprep.subr.mxu0 0.0
    %409 = vmatpush1.msra.mxu0 %v115
    %410 = vmatprep.mubr.f32.mxu0 %v195
    %411 = vmatmul.mubr.f32.gmra.mrb[0].mxu0 %v194
    %v412 = vpop.f32.mrb[0].mxu0
    %v413 = vadd.f32 %v343, %v412
    %v414 = vpop.f32.mrb[0].mxu0
    %415 = vdwg.mxu0
    %416 = vmatprep.subr.mxu0 0.0
    %417 = vmatpush1.msra.mxu0 %v116
    %418 = vmatprep.subr.mxu0 0.0
    %419 = vmatpush1.msra.mxu0 %v117
    %420 = vmatprep.subr.mxu0 0.0
    %421 = vmatpush1.msra.mxu0 0.0
    %422 = vmatprep.subr.mxu0 0.0
    %423 = vmatpush1.msra.mxu0 0.0
    %424 = vmatprep.subr.mxu0 0.0
    %425 = vmatpush1.msra.mxu0 0.0
    %426 = vmatprep.subr.mxu0 0.0
    %427 = vmatpush1.msra.mxu0 0.0
    %428 = vmatprep.subr.mxu0 0.0
    %429 = vmatpush1.msra.mxu0 0.0
    %430 = vmatprep.subr.mxu0 0.0
    %431 = vmatpush1.msra.mxu0 0.0
    %432 = vmatprep.subr.mxu0 0.0
    %433 = vmatpush1.msra.mxu0 0.0
    %434 = vmatprep.subr.mxu0 0.0
    %435 = vmatpush1.msra.mxu0 0.0
    %436 = vmatprep.subr.mxu0 0.0
    %437 = vmatpush1.msra.mxu0 0.0
    %438 = vmatprep.subr.mxu0 0.0
    %439 = vmatpush1.msra.mxu0 0.0
    %440 = vmatprep.subr.mxu0 0.0
    %441 = vmatpush1.msra.mxu0 0.0
    %442 = vmatprep.subr.mxu0 0.0
    %443 = vmatpush1.msra.mxu0 0.0
    %444 = vmatprep.subr.mxu0 0.0
    %445 = vmatpush1.msra.mxu0 0.0
    %446 = vmatprep.subr.mxu0 0.0
    %447 = vmatpush1.msra.mxu0 0.0
    %448 = vmatprep.subr.mxu0 0.0
    %449 = vmatpush1.msra.mxu0 0.0
    %450 = vmatprep.subr.mxu0 0.0
    %451 = vmatpush1.msra.mxu0 0.0
    %452 = vmatprep.subr.mxu0 0.0
    %453 = vmatpush1.msra.mxu0 0.0
    %454 = vmatprep.subr.mxu0 0.0
    %455 = vmatpush1.msra.mxu0 0.0
    %456 = vmatprep.subr.mxu0 0.0
    %457 = vmatpush1.msra.mxu0 0.0
    %458 = vmatprep.subr.mxu0 0.0
    %459 = vmatpush1.msra.mxu0 0.0
    %460 = vmatprep.subr.mxu0 0.0
    %461 = vmatpush1.msra.mxu0 0.0
    %462 = vmatprep.subr.mxu0 0.0
    %463 = vmatpush1.msra.mxu0 0.0
    %464 = vmatprep.subr.mxu0 0.0
    %465 = vmatpush1.msra.mxu0 0.0
    %466 = vmatprep.subr.mxu0 0.0
    %467 = vmatpush1.msra.mxu0 0.0
    %468 = vmatprep.subr.mxu0 0.0
    %469 = vmatpush1.msra.mxu0 0.0
    %470 = vmatprep.subr.mxu0 0.0
    %471 = vmatpush1.msra.mxu0 0.0
    %472 = vmatprep.subr.mxu0 0.0
    %473 = vmatpush1.msra.mxu0 0.0
    %474 = vmatprep.subr.mxu0 0.0
    %475 = vmatpush1.msra.mxu0 0.0
    %476 = vmatprep.subr.mxu0 0.0
    %477 = vmatpush1.msra.mxu0 0.0
    %478 = vmatprep.subr.mxu0 0.0
    %479 = vmatpush1.msra.mxu0 0.0
    %480 = vmatprep.mubr.f32.mxu0 0.0
    %481 = vmatmul.mubr.f32.gmra.mrb[0].mxu0 %v204
    %v482 = vpop.f32.mrb[0].mxu0
    %v483 = vadd.f32 %v413, %v482
    %v484 = vpop.f32.mrb[0].mxu0
    %485 = vdwg.mxu0
    %vm486 = vcmask 80896
    %487 = vst.msk [vmem:[#allocation2] sm:$0xff] %vm486, %v483
    // Predicated region
    $region10: #{tpu_custom_call.1} parent=1 // pred_check
      _
    $region11: #{tpu_custom_call.1} parent=1 // pred_check_branch
      %489 = sbr.rel (0) target = $region13
    $region12: #{tpu_custom_call.1} parent=1 // pred_region
      %s491 = ssub.s32 128, 32
      %492 = vsyncadd [#allocation3], %s491
      %s493 = sshll.u32 [#allocation2], 4
      %s494 = int_to_ptr.vmem [resolvable:$true] %s493
      %499 = dma.vmem_to_hbm [thread:$0]  %s494, 32, %s2, [#allocation3], 32, 32, 2
    $region13: #{tpu_custom_call.1} parent=1 // pred_fallthru
      _
    // Predicated region
    $region14: #{tpu_custom_call.1} parent=1 // pred_check
      _
    $region15: #{tpu_custom_call.1} parent=1 // pred_check_branch
      %501 = sbr.rel (0) target = $region17
    $region16: #{tpu_custom_call.1} parent=1 // pred_region
      %502 = dma.done [#allocation3], 128
    $region17: #{tpu_custom_call.1} parent=1 // pred_fallthru
      _
    %503 = vsyncpa [#allocation3], 1

</llo_original>
